<compile_context>
chip_gen: v5e
topology: v5e:2x2
jax: 0.10.0
libtpu: 0.0.40
codegen_flags: <defaults>
</compile_context>

<pallas_src>
import functools

import jax
import jax.numpy as jnp
import numpy as np
from jax.experimental import pallas as pl
from jax.experimental.pallas import tpu as pltpu


def _round_up(x, m):
    return ((x + m - 1) // m) * m


def attention_kernel(enc_ref, dec_ref, we_ref, wd_ref, b_ref, wf_ref,
                     awe_ref, alpha_ref, *, n_valid):
    """One grid step == one batch tile of TB rows; everything is VMEM-resident."""
    TB, Np, Ep = enc_ref.shape            # Np, Ep padded to multiples of 128
    A = we_ref.shape[1]                   # padded attention dim (multiple of 128)

    enc = enc_ref[...]                                                  # (TB, Np, Ep) f32

    # ---- MXU: bf16 operands, f32 accumulation --------------------------------
    att1 = jnp.dot(enc.astype(jnp.bfloat16).reshape(TB * Np, Ep), we_ref[...],
                   preferred_element_type=jnp.float32)                  # (TB*Np, A)
    att2 = jnp.dot(dec_ref[...].astype(jnp.bfloat16), wd_ref[...],
                   preferred_element_type=jnp.float32) + b_ref[...]     # (TB, A)
    # b_ref carries (b_enc + b_dec) fused in the wrapper; att1 needs no bias add.

    # ---- VPU/EUP (f32): relu, full_att contraction, softmax ------------------
    h = jnp.maximum(att1.reshape(TB, Np, A) + att2[:, None, :], 0.0)    # (TB, Np, A)
    # full_att: padded A-lanes carry zero weight, so they contribute nothing.
    scores = jnp.sum(h * wf_ref[...][None, :, :], axis=-1)              # (TB, Np)
    # (the full_att bias is dropped: shift-invariant under softmax, dead work)

    if n_valid < Np:  # mask padded pixel positions out of the softmax
        lane = jax.lax.broadcasted_iota(jnp.int32, (TB, Np), 1)
        scores = jnp.where(lane < n_valid, scores, -jnp.inf)

    m = jnp.max(scores, axis=-1, keepdims=True)
    p = jnp.exp(scores - m)
    alpha = p * pl.reciprocal(jnp.sum(p, axis=-1, keepdims=True), approx=True)
    alpha_ref[...] = alpha                                              # lane-dense (TB, Np)

    # ---- awe: VPU broadcast-mul + sublane reduce over N -----------------------
    # enc is already resident in VMEM; this frees the MXU (the M=1 batched
    # matmul had 1/128..1/256 row utilization).  Padded alpha entries are 0.
    awe_ref[...] = jnp.sum(enc * alpha[:, :, None], axis=1)             # (TB, Ep)


def _choose_batch_tile(B, N_pad, E_pad, D, A_pad, vmem_bytes):
    """Size the batch tile against the scoped-VMEM budget."""
    if B <= 8:
        return B
    # Per batch row: double-buffered f32 enc/dec/outputs + live f32 intermediates.
    per_row = 4 * (2 * N_pad * E_pad + 2 * D + 2 * (E_pad + N_pad)
                   + 3 * N_pad * A_pad)
    # Grid-invariant weights (bf16) + fused bias / w_full rows (f32), x2 buffers.
    fixed = 2 * 2 * (E_pad + D) * A_pad + 2 * 2 * A_pad * 4
    tb = (int(vmem_bytes * 0.75) - fixed) // per_row
    # Keep >= 2 grid steps so both v7x TensorCores get work when B allows.
    tb = max(8, min(tb, B // 2, 256))
    return (tb // 8) * 8


def attention_forward(encoder_out, decoder_hidden, params, *,
                      tb=None, vmem_limit_bytes=48 * 1024 * 1024):
    """params: dict with pre-transposed weights (in, out) and biases."""
    B, N, E = encoder_out.shape
    _, D = decoder_hidden.shape
    A = params["w_enc"].shape[1]

    A_pad = _round_up(A, 128)   # full-lane MXU output columns / unmasked bias add
    N_pad = _round_up(N, 128)   # lane-dense alpha stores + relayout-free reshapes
    E_pad = _round_up(E, 128)   # lane-dense awe stores

    def pad_to(x, shape):
        cfg = [(0, t - s) for s, t in zip(x.shape, shape)]
        return jnp.pad(x, cfg) if any(p for _, p in cfg) else x

    # Weights in bf16 for the MXU; biases / full_att row stay f32 (VPU path).
    w_enc = pad_to(params["w_enc"], (E_pad, A_pad)).astype(jnp.bfloat16)   # (E_pad, A_pad)
    w_dec = pad_to(params["w_dec"], (D, A_pad)).astype(jnp.bfloat16)       # (D, A_pad)
    b_fused = pad_to((params["b_enc"] + params["b_dec"]).reshape(1, A),
                     (1, A_pad))                                           # (1, A_pad) f32
    w_full = pad_to(params["w_full"].reshape(1, A), (1, A_pad))            # (1, A_pad) f32
    # params["b_full"] intentionally unused (softmax shift-invariance).

    TB = tb if tb is not None else _choose_batch_tile(
        B, N_pad, E_pad, D, A_pad, vmem_limit_bytes)
    TB = max(1, min(TB, B))
    B_pad = pl.cdiv(B, TB) * TB

    enc = pad_to(encoder_out, (B_pad, N_pad, E_pad))
    dec = pad_to(decoder_hidden, (B_pad, D))

    kernel = functools.partial(attention_kernel, n_valid=N)

    awe, alpha = pl.pallas_call(
        kernel,
        out_shape=(
            jax.ShapeDtypeStruct((B_pad, E_pad), jnp.float32),
            jax.ShapeDtypeStruct((B_pad, N_pad), jnp.float32),
        ),
        grid_spec=pltpu.PrefetchScalarGridSpec(
            num_scalar_prefetch=0,
            grid=(B_pad // TB,),
            in_specs=[
                pl.BlockSpec((TB, N_pad, E_pad), lambda b: (b, 0, 0)),  # encoder_out
                pl.BlockSpec((TB, D),            lambda b: (b, 0)),     # decoder_hidden
                pl.BlockSpec((E_pad, A_pad),     lambda b: (0, 0)),     # w_enc (bf16)
                pl.BlockSpec((D, A_pad),         lambda b: (0, 0)),     # w_dec (bf16)
                pl.BlockSpec((1, A_pad),         lambda b: (0, 0)),     # b_enc + b_dec
                pl.BlockSpec((1, A_pad),         lambda b: (0, 0)),     # w_full row
            ],
            out_specs=[
                pl.BlockSpec((TB, E_pad), lambda b: (b, 0)),            # awe
                pl.BlockSpec((TB, N_pad), lambda b: (b, 0)),            # alpha
            ],
        ),
        compiler_params=pltpu.CompilerParams(
            dimension_semantics=("parallel",),
            vmem_limit_bytes=vmem_limit_bytes),
    )(enc, dec, w_enc, w_dec, b_fused, w_full)

    return awe[:B, :E], alpha[:B, :N]


def reference_forward(encoder_out, decoder_hidden, params):
    att1 = encoder_out @ params["w_enc"] + params["b_enc"]
    att2 = decoder_hidden @ params["w_dec"] + params["b_dec"]
    h = jnp.maximum(att1 + att2[:, None, :], 0.0)
    att = (h @ params["w_full"] + params["b_full"])[..., 0]        # (B, N)
    alpha = jax.nn.softmax(att, axis=1)
    awe = jnp.sum(encoder_out * alpha[..., None], axis=1)
    return awe, alpha


if __name__ == "__main__":
    # Small shapes consistent with the module's forward.
    B, N = 2, 16            # batch, num attended positions
    E, D, A = 32, 48, 64    # encoder_dim, decoder_dim, attention_dim

    key = jax.random.PRNGKey(0)
    ks = jax.random.split(key, 8)

    encoder_out = jax.random.normal(ks[0], (B, N, E), dtype=jnp.float32)
    decoder_hidden = jax.random.normal(ks[1], (B, D), dtype=jnp.float32)

    # Deterministic parameter init (uniform, Linear-style), pre-transposed to (in, out).
    def lin_init(kw, kb, fan_in, fan_out):
        bound = 1.0 / np.sqrt(fan_in)
        w = jax.random.uniform(kw, (fan_in, fan_out), jnp.float32, -bound, bound)
        b = jax.random.uniform(kb, (fan_out,), jnp.float32, -bound, bound)
        return w, b

    w_enc, b_enc = lin_init(ks[2], ks[3], E, A)
    w_dec, b_dec = lin_init(ks[4], ks[5], D, A)
    w_full, b_full = lin_init(ks[6], ks[7], A, 1)

    params = dict(w_enc=w_enc, b_enc=b_enc,
                  w_dec=w_dec, b_dec=b_dec,
                  w_full=w_full, b_full=b_full)

    awe, alpha = attention_forward(encoder_out, decoder_hidden, params)
    awe = jax.block_until_ready(awe)
    alpha = jax.block_until_ready(alpha)

    awe_ref, alpha_ref = reference_forward(encoder_out, decoder_hidden, params)
    assert awe.shape == (B, E) and alpha.shape == (B, N)
    # Tolerance relaxed for bf16 MXU operands (f32 accumulation & softmax).
    np.testing.assert_allclose(np.asarray(awe), np.asarray(awe_ref),
                               rtol=2e-2, atol=5e-3)
    np.testing.assert_allclose(np.asarray(alpha), np.asarray(alpha_ref),
                               rtol=2e-2, atol=5e-3)

    print("KERNEL_OK")
</pallas_src>

<mosaic_0001>
module attributes {stable_mosaic.version = 11 : i64} {
  func.func @attention_kernel(%arg0: i32, %arg1: memref<2x128x128xf32, #tpu.memory_space<vmem>>, %arg2: memref<2x48xf32, #tpu.memory_space<vmem>>, %arg3: memref<128x128xbf16, #tpu.memory_space<vmem>>, %arg4: memref<48x128xbf16, #tpu.memory_space<vmem>>, %arg5: memref<1x128xf32, #tpu.memory_space<vmem>>, %arg6: memref<1x128xf32, #tpu.memory_space<vmem>>, %arg7: memref<2x128xf32, #tpu.memory_space<vmem>>, %arg8: memref<2x128xf32, #tpu.memory_space<vmem>>) attributes {dimension_semantics = [#tpu.dimension_semantics<parallel>], iteration_bounds = array<i64: 1>, scalar_prefetch = 0 : i64, scratch_operands = 0 : i64, tpu.core_type = #tpu.core_type<tc>, window_params = [{transform_indices = @transform_0, window_bounds = array<i64: 2, 128, 128>}, {transform_indices = @transform_1, window_bounds = array<i64: 2, 48>}, {pipeline_mode = #tpu.pipeline_mode<synchronous>, transform_indices = @transform_2, window_bounds = array<i64: 128, 128>}, {pipeline_mode = #tpu.pipeline_mode<synchronous>, transform_indices = @transform_3, window_bounds = array<i64: 48, 128>}, {pipeline_mode = #tpu.pipeline_mode<synchronous>, transform_indices = @transform_4, window_bounds = array<i64: 1, 128>}, {pipeline_mode = #tpu.pipeline_mode<synchronous>, transform_indices = @transform_5, window_bounds = array<i64: 1, 128>}, {transform_indices = @transform_6, window_bounds = array<i64: 2, 128>}, {transform_indices = @transform_7, window_bounds = array<i64: 2, 128>}]} {
    %c0 = arith.constant 0 : index
    %c0_0 = arith.constant 0 : index
    %c0_1 = arith.constant 0 : index
    %0 = vector.load %arg1[%c0, %c0_0, %c0_1] : memref<2x128x128xf32, #tpu.memory_space<vmem>>, vector<2x128x128xf32>
    %1 = arith.truncf %0 : vector<2x128x128xf32> to vector<2x128x128xbf16>
    %2 = vector.shape_cast %1 : vector<2x128x128xbf16> to vector<256x128xbf16>
    %c0_2 = arith.constant 0 : index
    %c0_3 = arith.constant 0 : index
    %3 = vector.load %arg3[%c0_2, %c0_3] : memref<128x128xbf16, #tpu.memory_space<vmem>>, vector<128x128xbf16>
    %cst = arith.constant dense<0.000000e+00> : vector<256x128xf32>
    %4 = tpu.matmul %2, %3, %cst {dimension_numbers = #tpu.dot_dimension_numbers<[1], [0], [0], [1], [0, 0, 1, 1], [], []>} : vector<256x128xbf16>, vector<128x128xbf16>, vector<256x128xf32> -> vector<256x128xf32>
    %c0_4 = arith.constant 0 : index
    %c0_5 = arith.constant 0 : index
    %5 = vector.load %arg2[%c0_4, %c0_5] : memref<2x48xf32, #tpu.memory_space<vmem>>, vector<2x48xf32>
    %6 = arith.truncf %5 : vector<2x48xf32> to vector<2x48xbf16>
    %c0_6 = arith.constant 0 : index
    %c0_7 = arith.constant 0 : index
    %7 = vector.load %arg4[%c0_6, %c0_7] : memref<48x128xbf16, #tpu.memory_space<vmem>>, vector<48x128xbf16>
    %cst_8 = arith.constant dense<0.000000e+00> : vector<2x128xf32>
    %8 = tpu.matmul %6, %7, %cst_8 {dimension_numbers = #tpu.dot_dimension_numbers<[1], [0], [0], [1], [0, 0, 1, 1], [], []>} : vector<2x48xbf16>, vector<48x128xbf16>, vector<2x128xf32> -> vector<2x128xf32>
    %c0_9 = arith.constant 0 : index
    %c0_10 = arith.constant 0 : index
    %9 = vector.load %arg5[%c0_9, %c0_10] : memref<1x128xf32, #tpu.memory_space<vmem>>, vector<1x128xf32>
    %10 = vector.broadcast %9 : vector<1x128xf32> to vector<2x128xf32>
    %11 = arith.addf %8, %10 : vector<2x128xf32>
    %12 = vector.shape_cast %4 : vector<256x128xf32> to vector<2x128x128xf32>
    %13 = vector.shape_cast %11 : vector<2x128xf32> to vector<2x1x128xf32>
    %14 = vector.broadcast %13 : vector<2x1x128xf32> to vector<2x128x128xf32>
    %15 = arith.addf %12, %14 : vector<2x128x128xf32>
    %cst_11 = arith.constant 0.000000e+00 : f32
    %16 = vector.broadcast %cst_11 : f32 to vector<2x128x128xf32>
    %17 = arith.maximumf %15, %16 : vector<2x128x128xf32>
    %c0_12 = arith.constant 0 : index
    %c0_13 = arith.constant 0 : index
    %18 = vector.load %arg6[%c0_12, %c0_13] : memref<1x128xf32, #tpu.memory_space<vmem>>, vector<1x128xf32>
    %19 = vector.shape_cast %18 : vector<1x128xf32> to vector<1x1x128xf32>
    %20 = vector.broadcast %19 : vector<1x1x128xf32> to vector<2x128x128xf32>
    %21 = arith.mulf %17, %20 : vector<2x128x128xf32>
    %cst_14 = arith.constant dense<0.000000e+00> : vector<2x128xf32>
    %22 = vector.multi_reduction <add>, %21, %cst_14 [2] : vector<2x128x128xf32> to vector<2x128xf32>
    %23 = tpu.iota {dimensions = array<i32: 1>} : vector<2x128xi32>
    %c16_i32 = arith.constant 16 : i32
    %24 = vector.broadcast %c16_i32 : i32 to vector<2x128xi32>
    %25 = arith.cmpi slt, %23, %24 : vector<2x128xi32>
    %cst_15 = arith.constant 0xFF800000 : f32
    %26 = vector.broadcast %cst_15 : f32 to vector<2x128xf32>
    %27 = arith.select %25, %22, %26 : vector<2x128xi1>, vector<2x128xf32>
    %cst_16 = arith.constant dense<0xFF800000> : vector<2xf32>
    %28 = vector.multi_reduction <maximumf>, %27, %cst_16 [1] : vector<2x128xf32> to vector<2xf32>
    %29 = vector.shape_cast %28 : vector<2xf32> to vector<2x1xf32>
    %30 = vector.broadcast %29 : vector<2x1xf32> to vector<2x128xf32>
    %31 = arith.subf %27, %30 : vector<2x128xf32>
    %32 = math.exp %31 : vector<2x128xf32>
    %cst_17 = arith.constant dense<0.000000e+00> : vector<2xf32>
    %33 = vector.multi_reduction <add>, %32, %cst_17 [1] : vector<2x128xf32> to vector<2xf32>
    %34 = vector.shape_cast %33 : vector<2xf32> to vector<2x1xf32>
    %35 = tpu.reciprocal %34 {approx = true} : vector<2x1xf32> -> vector<2x1xf32>
    %36 = vector.broadcast %35 : vector<2x1xf32> to vector<2x128xf32>
    %37 = arith.mulf %32, %36 : vector<2x128xf32>
    %c0_18 = arith.constant 0 : index
    %c0_19 = arith.constant 0 : index
    %38 = vector.load %arg8[%c0_18, %c0_19] : memref<2x128xf32, #tpu.memory_space<vmem>>, vector<2x128xf32>
    tpu.vector_store %arg8[%c0_18, %c0_19], %37 {strides = array<i32>} : memref<2x128xf32, #tpu.memory_space<vmem>>, vector<2x128xf32>,
    %39 = vector.shape_cast %37 : vector<2x128xf32> to vector<2x128x1xf32>
    %40 = vector.broadcast %39 : vector<2x128x1xf32> to vector<2x128x128xf32>
    %41 = arith.mulf %0, %40 : vector<2x128x128xf32>
    %cst_20 = arith.constant dense<0.000000e+00> : vector<2x128xf32>
    %42 = vector.multi_reduction <add>, %41, %cst_20 [1] : vector<2x128x128xf32> to vector<2x128xf32>
    %c0_21 = arith.constant 0 : index
    %c0_22 = arith.constant 0 : index
    %43 = vector.load %arg7[%c0_21, %c0_22] : memref<2x128xf32, #tpu.memory_space<vmem>>, vector<2x128xf32>
    tpu.vector_store %arg7[%c0_21, %c0_22], %42 {strides = array<i32>} : memref<2x128xf32, #tpu.memory_space<vmem>>, vector<2x128xf32>,
    return
  }
  func.func @transform_0(%arg0: i32) -> (i32, i32, i32) {
    %c0_i32 = arith.constant 0 : i32
    %c0_i32_0 = arith.constant 0 : i32
    %c0_i32_1 = arith.constant 0 : i32
    return %arg0, %c0_i32, %c0_i32_0 : i32, i32, i32
  }
  func.func @transform_1(%arg0: i32) -> (i32, i32) {
    %c0_i32 = arith.constant 0 : i32
    %c0_i32_0 = arith.constant 0 : i32
    return %arg0, %c0_i32 : i32, i32
  }
  func.func @transform_2(%arg0: i32) -> (i32, i32) {
    %c0_i32 = arith.constant 0 : i32
    %c0_i32_0 = arith.constant 0 : i32
    %c0_i32_1 = arith.constant 0 : i32
    return %c0_i32, %c0_i32_0 : i32, i32
  }
  func.func @transform_3(%arg0: i32) -> (i32, i32) {
    %c0_i32 = arith.constant 0 : i32
    %c0_i32_0 = arith.constant 0 : i32
    %c0_i32_1 = arith.constant 0 : i32
    return %c0_i32, %c0_i32_0 : i32, i32
  }
  func.func @transform_4(%arg0: i32) -> (i32, i32) {
    %c0_i32 = arith.constant 0 : i32
    %c0_i32_0 = arith.constant 0 : i32
    %c0_i32_1 = arith.constant 0 : i32
    return %c0_i32, %c0_i32_0 : i32, i32
  }
  func.func @transform_5(%arg0: i32) -> (i32, i32) {
    %c0_i32 = arith.constant 0 : i32
    %c0_i32_0 = arith.constant 0 : i32
    %c0_i32_1 = arith.constant 0 : i32
    return %c0_i32, %c0_i32_0 : i32, i32
  }
  func.func @transform_6(%arg0: i32) -> (i32, i32) {
    %c0_i32 = arith.constant 0 : i32
    %c0_i32_0 = arith.constant 0 : i32
    return %arg0, %c0_i32 : i32, i32
  }
  func.func @transform_7(%arg0: i32) -> (i32, i32) {
    %c0_i32 = arith.constant 0 : i32
    %c0_i32_0 = arith.constant 0 : i32
    return %arg0, %c0_i32 : i32, i32
  }
}

</mosaic_0001>

<llo_original>
// kernel: tpu_custom_call.1
$region0: #{tpu_custom_call.1}
  #allocation0 [shape = 'u32[]', space=smem, size = 0x4, offset = 0x4, fixed_abs, tag = 'smem constant byte address 0x4 - core index']
  #allocation1 [shape = 'u32[72,128]{1,0:T(1,128)}', space=vmem, size = 0x9000, scoped, tag = 'internal scratch']
  %s0 = inlined_call_operand.hbm [shape: f32[2,128,128], index: 0, kind: input, shape index: {}]
  %s1 = inlined_call_operand.hbm [shape: f32[2,48], index: 1, kind: input, shape index: {}]
  %s2 = inlined_call_operand.hbm [shape: bf16[128,128], index: 2, kind: input, shape index: {}]
  %s3 = inlined_call_operand.hbm [shape: bf16[48,128], index: 3, kind: input, shape index: {}]
  %s4 = inlined_call_operand.vmem [shape: f32[1,128], index: 4, kind: input, shape index: {}]
  %s5 = inlined_call_operand.vmem [shape: f32[1,128], index: 5, kind: input, shape index: {}]
  %s6 = inlined_call_operand.hbm [shape: f32[2,128], index: 6, kind: output, shape index: {0}]
  %s7 = inlined_call_operand.hbm [shape: f32[2,128], index: 7, kind: output, shape index: {1}]
  %8 = xla_tuple %s6, %s7
  %s9 = sld [smem:[#allocation0]]
  $region58: #{tpu_custom_call.1} parent=0
    _
  %s11 = ssub.s32 1, %s9
  %s12 = scalar_select 0, %s11, %s9
  $region1: #{tpu_custom_call.1} parent=0
    #allocation2 [shape = 'u8[131072]{0}', space=vmem, size = 0x20000, scoped, tag = 'input window, operand 0, single buffered']
    #allocation3 [shape = 's32[1]{0}', space=sflag, size = 0x4, scoped, tag = 'scoped memory for tpu_custom_call.1']
    #allocation4 [shape = 's32[1]{0}', space=sflag, size = 0x4, scoped, tag = 'scoped memory for tpu_custom_call.1']
    #allocation5 [shape = 'u8[1024]{0}', space=vmem, size = 0x400, scoped, tag = 'input window, operand 1, single buffered']
    #allocation6 [shape = 's32[1]{0}', space=sflag, size = 0x4, scoped, tag = 'scoped memory for tpu_custom_call.1']
    #allocation7 [shape = 'u8[32768]{0}', space=vmem, size = 0x8000, scoped, tag = 'input window, operand 2, single buffered']
    #allocation8 [shape = 'u8[12288]{0}', space=vmem, size = 0x3000, scoped, tag = 'input window, operand 3, single buffered']
    #allocation9 [shape = 's32[1]{0}', space=sflag, size = 0x4, scoped, tag = 'scoped memory for tpu_custom_call.1']
    #allocation10 [shape = 'u8[1024]{0}', space=vmem, size = 0x400, scoped, tag = 'output window, operand 0, single buffered']
    #allocation11 [shape = 'u8[1024]{0}', space=vmem, size = 0x400, scoped, tag = 'output window, operand 1, single buffered']
    #allocation12 [shape = 's32[1]{0}', space=sflag, size = 0x4, scoped, tag = 'scoped memory for tpu_custom_call.1']
    %13 = vsyncpa [#allocation3], 0
    %14 = vsyncpa [#allocation6], 0
    %15 = vsyncpa [#allocation9], 0
    %16 = vsyncpa [#allocation4], 0
    %17 = vsyncpa [#allocation12], 0
    // Predicated region
    $region2: #{tpu_custom_call.1} parent=1 // pred_check
      _
    $region3: #{tpu_custom_call.1} parent=1 // pred_check_branch
      %19 = sbr.rel (0) target = $region5
    $region4: #{tpu_custom_call.1} parent=1 // pred_region
      %21 = vsyncadd [#allocation3], 0
      %s22 = sshll.u32 %s0, 4
      %s23 = int_to_ptr.hbm [resolvable:$true] %s22
      %s24 = sshll.u32 [#allocation2], 4
      %s25 = int_to_ptr.vmem [resolvable:$true] %s24
      %30 = dma.hbm_to_vmem [thread:$0]  %s23, 4096, %s25, [#allocation3], 128, 128, 8
    $region5: #{tpu_custom_call.1} parent=1 // pred_fallthru
      _
    // Predicated region
    $region6: #{tpu_custom_call.1} parent=1 // pred_check
      _
    $region7: #{tpu_custom_call.1} parent=1 // pred_check_branch
      %32 = sbr.rel (0) target = $region9
    $region8: #{tpu_custom_call.1} parent=1 // pred_region
      %34 = vsyncadd [#allocation6], 0
      %s36 = sshll.u32 %s1, 4
      %s37 = int_to_ptr.hbm [resolvable:$true] %s36
      %s38 = sshll.u32 [#allocation5], 4
      %s39 = int_to_ptr.vmem [resolvable:$true] %s38
      %41 = dma.hbm_to_vmem [thread:$0]  %s37, 32, %s39, [#allocation6]
    $region9: #{tpu_custom_call.1} parent=1 // pred_fallthru
      _
    // Predicated region
    $region10: #{tpu_custom_call.1} parent=1 // pred_check
      _
    $region11: #{tpu_custom_call.1} parent=1 // pred_check_branch
      %43 = sbr.rel (0) target = $region13
    $region12: #{tpu_custom_call.1} parent=1 // pred_region
      %45 = vsyncadd [#allocation6], 0
      %s46 = sshll.u32 %s2, 4
      %s47 = int_to_ptr.hbm [resolvable:$true] %s46
      %s48 = sshll.u32 [#allocation7], 4
      %s49 = int_to_ptr.vmem [resolvable:$true] %s48
      %54 = dma.hbm_to_vmem [thread:$0]  %s47, 1024, %s49, [#allocation6], 64, 64, 4
    $region13: #{tpu_custom_call.1} parent=1 // pred_fallthru
      _
    // Predicated region
    $region14: #{tpu_custom_call.1} parent=1 // pred_check
      _
    $region15: #{tpu_custom_call.1} parent=1 // pred_check_branch
      %56 = sbr.rel (0) target = $region17
    $region16: #{tpu_custom_call.1} parent=1 // pred_region
      %58 = vsyncadd [#allocation9], 0
      %s59 = sshll.u32 %s3, 4
      %s60 = int_to_ptr.hbm [resolvable:$true] %s59
      %s61 = sshll.u32 [#allocation8], 4
      %s62 = int_to_ptr.vmem [resolvable:$true] %s61
      %67 = dma.hbm_to_vmem [thread:$0]  %s60, 384, %s62, [#allocation9], 64, 64, 4
    $region17: #{tpu_custom_call.1} parent=1 // pred_fallthru
      _
    // Predicated region
    $region18: #{tpu_custom_call.1} parent=1 // pred_check
      _
    $region19: #{tpu_custom_call.1} parent=1 // pred_check_branch
      %69 = sbr.rel (0) target = $region21
    $region20: #{tpu_custom_call.1} parent=1 // pred_region
      _
    $region21: #{tpu_custom_call.1} parent=1 // pred_fallthru
      _
    // Predicated region
    $region22: #{tpu_custom_call.1} parent=1 // pred_check
      _
    $region23: #{tpu_custom_call.1} parent=1 // pred_check_branch
      %71 = sbr.rel (0) target = $region25
    $region24: #{tpu_custom_call.1} parent=1 // pred_region
      _
    $region25: #{tpu_custom_call.1} parent=1 // pred_fallthru
      _
    // Predicated region
    $region26: #{tpu_custom_call.1} parent=1 // pred_check
      _
    $region27: #{tpu_custom_call.1} parent=1 // pred_check_branch
      %73 = sbr.rel (0) target = $region29
    $region28: #{tpu_custom_call.1} parent=1 // pred_region
      %75 = dma.done [#allocation3], 4096
    $region29: #{tpu_custom_call.1} parent=1 // pred_fallthru
      _
    // Predicated region
    $region30: #{tpu_custom_call.1} parent=1 // pred_check
      _
    $region31: #{tpu_custom_call.1} parent=1 // pred_check_branch
      %77 = sbr.rel (0) target = $region33
    $region32: #{tpu_custom_call.1} parent=1 // pred_region
      %79 = dma.done [#allocation6], 32
    $region33: #{tpu_custom_call.1} parent=1 // pred_fallthru
      _
    // Predicated region
    $region34: #{tpu_custom_call.1} parent=1 // pred_check
      _
    $region35: #{tpu_custom_call.1} parent=1 // pred_check_branch
      %81 = sbr.rel (0) target = $region37
    $region36: #{tpu_custom_call.1} parent=1 // pred_region
      %83 = dma.done [#allocation6], 1024
    $region37: #{tpu_custom_call.1} parent=1 // pred_fallthru
      _
    // Predicated region
    $region38: #{tpu_custom_call.1} parent=1 // pred_check
      _
    $region39: #{tpu_custom_call.1} parent=1 // pred_check_branch
      %85 = sbr.rel (0) target = $region41
    $region40: #{tpu_custom_call.1} parent=1 // pred_region
      %87 = dma.done [#allocation9], 384
    $region41: #{tpu_custom_call.1} parent=1 // pred_fallthru
      _
    %v89 = vld [vmem:[#allocation2] sm:$0xff]
    %v90 = vld [vmem:[#allocation2 + $0x8] sm:$0xff]
    %v91 = vld [vmem:[#allocation2 + $0x10] sm:$0xff]
    %v92 = vld [vmem:[#allocation2 + $0x18] sm:$0xff]
    %v93 = vld [vmem:[#allocation2 + $0x20] sm:$0xff]
    %v94 = vld [vmem:[#allocation2 + $0x28] sm:$0xff]
    %v95 = vld [vmem:[#allocation2 + $0x30] sm:$0xff]
    %v96 = vld [vmem:[#allocation2 + $0x38] sm:$0xff]
    %v97 = vld [vmem:[#allocation2 + $0x40] sm:$0xff]
    %v98 = vld [vmem:[#allocation2 + $0x48] sm:$0xff]
    %v99 = vld [vmem:[#allocation2 + $0x50] sm:$0xff]
    %v100 = vld [vmem:[#allocation2 + $0x58] sm:$0xff]
    %v101 = vld [vmem:[#allocation2 + $0x60] sm:$0xff]
    %v102 = vld [vmem:[#allocation2 + $0x68] sm:$0xff]
    %v103 = vld [vmem:[#allocation2 + $0x70] sm:$0xff]
    %v104 = vld [vmem:[#allocation2 + $0x78] sm:$0xff]
    %v105 = vld [vmem:[#allocation2 + $0x80] sm:$0xff]
    %v106 = vld [vmem:[#allocation2 + $0x88] sm:$0xff]
    %v107 = vld [vmem:[#allocation2 + $0x90] sm:$0xff]
    %v108 = vld [vmem:[#allocation2 + $0x98] sm:$0xff]
    %v109 = vld [vmem:[#allocation2 + $0xa0] sm:$0xff]
    %v110 = vld [vmem:[#allocation2 + $0xa8] sm:$0xff]
    %v111 = vld [vmem:[#allocation2 + $0xb0] sm:$0xff]
    %v112 = vld [vmem:[#allocation2 + $0xb8] sm:$0xff]
    %v113 = vld [vmem:[#allocation2 + $0xc0] sm:$0xff]
    %v114 = vld [vmem:[#allocation2 + $0xc8] sm:$0xff]
    %v115 = vld [vmem:[#allocation2 + $0xd0] sm:$0xff]
    %v116 = vld [vmem:[#allocation2 + $0xd8] sm:$0xff]
    %v117 = vld [vmem:[#allocation2 + $0xe0] sm:$0xff]
    %v118 = vld [vmem:[#allocation2 + $0xe8] sm:$0xff]
    %v119 = vld [vmem:[#allocation2 + $0xf0] sm:$0xff]
    %v120 = vld [vmem:[#allocation2 + $0xf8] sm:$0xff]
    %v121 = vpack.c.bf16 %v89, %v89
    %v122 = vpack.c.bf16 %v90, %v90
    %v123 = vpack.c.bf16 %v91, %v91
    %v124 = vpack.c.bf16 %v92, %v92
    %v125 = vpack.c.bf16 %v93, %v93
    %v126 = vpack.c.bf16 %v94, %v94
    %v127 = vpack.c.bf16 %v95, %v95
    %v128 = vpack.c.bf16 %v96, %v96
    %v129 = vpack.c.bf16 %v97, %v97
    %v130 = vpack.c.bf16 %v98, %v98
    %v131 = vpack.c.bf16 %v99, %v99
    %v132 = vpack.c.bf16 %v100, %v100
    %v133 = vpack.c.bf16 %v101, %v101
    %v134 = vpack.c.bf16 %v102, %v102
    %v135 = vpack.c.bf16 %v103, %v103
    %v136 = vpack.c.bf16 %v104, %v104
    %v137 = vpack.c.bf16 %v105, %v105
    %v138 = vpack.c.bf16 %v106, %v106
    %v139 = vpack.c.bf16 %v107, %v107
    %v140 = vpack.c.bf16 %v108, %v108
    %v141 = vpack.c.bf16 %v109, %v109
    %v142 = vpack.c.bf16 %v110, %v110
    %v143 = vpack.c.bf16 %v111, %v111
    %v144 = vpack.c.bf16 %v112, %v112
    %v145 = vpack.c.bf16 %v113, %v113
    %v146 = vpack.c.bf16 %v114, %v114
    %v147 = vpack.c.bf16 %v115, %v115
    %v148 = vpack.c.bf16 %v116, %v116
    %v149 = vpack.c.bf16 %v117, %v117
    %v150 = vpack.c.bf16 %v118, %v118
    %v151 = vpack.c.bf16 %v119, %v119
    %v152 = vpack.c.bf16 %v120, %v120
    %v153 = vld [vmem:[#allocation7] sm:$0xf]
    %v154 = vld [vmem:[#allocation7 + $0x4] sm:$0xf]
    %v155 = vld [vmem:[#allocation7 + $0x8] sm:$0xf]
    %v156 = vld [vmem:[#allocation7 + $0xc] sm:$0xf]
    %v157 = vld [vmem:[#allocation7 + $0x10] sm:$0xf]
    %v158 = vld [vmem:[#allocation7 + $0x14] sm:$0xf]
    %v159 = vld [vmem:[#allocation7 + $0x18] sm:$0xf]
    %v160 = vld [vmem:[#allocation7 + $0x1c] sm:$0xf]
    %v161 = vld [vmem:[#allocation7 + $0x20] sm:$0xf]
    %v162 = vld [vmem:[#allocation7 + $0x24] sm:$0xf]
    %v163 = vld [vmem:[#allocation7 + $0x28] sm:$0xf]
    %v164 = vld [vmem:[#allocation7 + $0x2c] sm:$0xf]
    %v165 = vld [vmem:[#allocation7 + $0x30] sm:$0xf]
    %v166 = vld [vmem:[#allocation7 + $0x34] sm:$0xf]
    %v167 = vld [vmem:[#allocation7 + $0x38] sm:$0xf]
    %v168 = vld [vmem:[#allocation7 + $0x3c] sm:$0xf]
    %v201 = vunpack.c.l.b16 %v121
    %v202 = vunpack.c.l.b16 %v122
    %v203 = vunpack.c.l.b16 %v123
    %v204 = vunpack.c.l.b16 %v124
    %v205 = vunpack.c.l.b16 %v125
    %v206 = vunpack.c.l.b16 %v126
    %v207 = vunpack.c.l.b16 %v127
    %v208 = vunpack.c.l.b16 %v128
    %v209 = vunpack.c.l.b16 %v129
    %v210 = vunpack.c.l.b16 %v130
    %v211 = vunpack.c.l.b16 %v131
    %v212 = vunpack.c.l.b16 %v132
    %v213 = vunpack.c.l.b16 %v133
    %v214 = vunpack.c.l.b16 %v134
    %v215 = vunpack.c.l.b16 %v135
    %v216 = vunpack.c.l.b16 %v136
    %v217 = vunpack.c.l.b16 %v137
    %v218 = vunpack.c.l.b16 %v138
    %v219 = vunpack.c.l.b16 %v139
    %v220 = vunpack.c.l.b16 %v140
    %v221 = vunpack.c.l.b16 %v141
    %v222 = vunpack.c.l.b16 %v142
    %v223 = vunpack.c.l.b16 %v143
    %v224 = vunpack.c.l.b16 %v144
    %v225 = vunpack.c.l.b16 %v145
    %v226 = vunpack.c.l.b16 %v146
    %v227 = vunpack.c.l.b16 %v147
    %v228 = vunpack.c.l.b16 %v148
    %v229 = vunpack.c.l.b16 %v149
    %v230 = vunpack.c.l.b16 %v150
    %v231 = vunpack.c.l.b16 %v151
    %v232 = vunpack.c.l.b16 %v152
    %v233 = vpack.c.b16 %v202, %v201
    %v234 = vpack.c.b16 %v204, %v203
    %v235 = vpack.c.b16 %v206, %v205
    %v236 = vpack.c.b16 %v208, %v207
    %v237 = vpack.c.b16 %v210, %v209
    %v238 = vpack.c.b16 %v212, %v211
    %v239 = vpack.c.b16 %v214, %v213
    %v240 = vpack.c.b16 %v216, %v215
    %v241 = vpack.c.b16 %v218, %v217
    %v242 = vpack.c.b16 %v220, %v219
    %v243 = vpack.c.b16 %v222, %v221
    %v244 = vpack.c.b16 %v224, %v223
    %v245 = vpack.c.b16 %v226, %v225
    %v246 = vpack.c.b16 %v228, %v227
    %v247 = vpack.c.b16 %v230, %v229
    %v248 = vpack.c.b16 %v232, %v231
    %v281 = vunpack.c.l.b16 %v153
    %v282 = vunpack.c.l.b16 %v154
    %v283 = vunpack.c.l.b16 %v155
    %v284 = vunpack.c.l.b16 %v156
    %v285 = vunpack.c.l.b16 %v157
    %v286 = vunpack.c.l.b16 %v158
    %v287 = vunpack.c.l.b16 %v159
    %v288 = vunpack.c.l.b16 %v160
    %v289 = vunpack.c.l.b16 %v161
    %v290 = vunpack.c.l.b16 %v162
    %v291 = vunpack.c.l.b16 %v163
    %v292 = vunpack.c.l.b16 %v164
    %v293 = vunpack.c.l.b16 %v165
    %v294 = vunpack.c.l.b16 %v166
    %v295 = vunpack.c.l.b16 %v167
    %v296 = vunpack.c.l.b16 %v168
    %v297 = vpack.c.b16 %v282, %v281
    %v298 = vpack.c.b16 %v284, %v283
    %v299 = vpack.c.b16 %v286, %v285
    %v300 = vpack.c.b16 %v288, %v287
    %v301 = vpack.c.b16 %v290, %v289
    %v302 = vpack.c.b16 %v292, %v291
    %v303 = vpack.c.b16 %v294, %v293
    %v304 = vpack.c.b16 %v296, %v295
    %313 = vmatpush.bf16.msra.mxu0 %v304
    %314 = vmatpush.bf16.msra.mxu0 %v303
    %315 = vmatpush.bf16.msra.mxu0 %v302
    %316 = vmatpush.bf16.msra.mxu0 %v301
    %317 = vmatpush.bf16.msra.mxu0 %v300
    %318 = vmatpush.bf16.msra.mxu0 %v299
    %319 = vmatpush.bf16.msra.mxu0 %v298
    %320 = vmatpush.bf16.msra.mxu0 %v297
    %321 = vmatmul.bf16.gmra.mxu0 %v233
    %v322 = vpop.f32.mrf.mxu0
    %v323 = vadd.f32 0.0, %v322
    %v324 = vpop.f32.mrf.mxu0
    %v325 = vadd.f32 0.0, %v324
    %326 = vmatmul.bf16.gmra.mxu0 %v234
    %v327 = vpop.f32.mrf.mxu0
    %v328 = vadd.f32 0.0, %v327
    %v329 = vpop.f32.mrf.mxu0
    %v330 = vadd.f32 0.0, %v329
    %331 = vmatmul.bf16.gmra.mxu0 %v235
    %v332 = vpop.f32.mrf.mxu0
    %v333 = vadd.f32 0.0, %v332
    %v334 = vpop.f32.mrf.mxu0
    %v335 = vadd.f32 0.0, %v334
    %336 = vmatmul.bf16.gmra.mxu0 %v236
    %v337 = vpop.f32.mrf.mxu0
    %v338 = vadd.f32 0.0, %v337
    %v339 = vpop.f32.mrf.mxu0
    %v340 = vadd.f32 0.0, %v339
    %341 = vmatmul.bf16.gmra.mxu0 %v237
    %v342 = vpop.f32.mrf.mxu0
    %v343 = vadd.f32 0.0, %v342
    %v344 = vpop.f32.mrf.mxu0
    %v345 = vadd.f32 0.0, %v344
    %346 = vmatmul.bf16.gmra.mxu0 %v238
    %v347 = vpop.f32.mrf.mxu0
    %v348 = vadd.f32 0.0, %v347
    %v349 = vpop.f32.mrf.mxu0
    %v350 = vadd.f32 0.0, %v349
    %351 = vmatmul.bf16.gmra.mxu0 %v239
    %v352 = vpop.f32.mrf.mxu0
    %v353 = vadd.f32 0.0, %v352
    %v354 = vpop.f32.mrf.mxu0
    %v355 = vadd.f32 0.0, %v354
    %356 = vmatmul.bf16.gmra.mxu0 %v240
    %v357 = vpop.f32.mrf.mxu0
    %v358 = vadd.f32 0.0, %v357
    %v359 = vpop.f32.mrf.mxu0
    %v360 = vadd.f32 0.0, %v359
    %361 = vmatmul.bf16.gmra.mxu0 %v241
    %v362 = vpop.f32.mrf.mxu0
    %v363 = vadd.f32 0.0, %v362
    %v364 = vpop.f32.mrf.mxu0
    %v365 = vadd.f32 0.0, %v364
    %366 = vmatmul.bf16.gmra.mxu0 %v242
    %v367 = vpop.f32.mrf.mxu0
    %v368 = vadd.f32 0.0, %v367
    %v369 = vpop.f32.mrf.mxu0
    %v370 = vadd.f32 0.0, %v369
    %371 = vmatmul.bf16.gmra.mxu0 %v243
    %v372 = vpop.f32.mrf.mxu0
    %v373 = vadd.f32 0.0, %v372
    %v374 = vpop.f32.mrf.mxu0
    %v375 = vadd.f32 0.0, %v374
    %376 = vmatmul.bf16.gmra.mxu0 %v244
    %v377 = vpop.f32.mrf.mxu0
    %v378 = vadd.f32 0.0, %v377
    %v379 = vpop.f32.mrf.mxu0
    %v380 = vadd.f32 0.0, %v379
    %381 = vmatmul.bf16.gmra.mxu0 %v245
    %v382 = vpop.f32.mrf.mxu0
    %v383 = vadd.f32 0.0, %v382
    %v384 = vpop.f32.mrf.mxu0
    %v385 = vadd.f32 0.0, %v384
    %386 = vmatmul.bf16.gmra.mxu0 %v246
    %v387 = vpop.f32.mrf.mxu0
    %v388 = vadd.f32 0.0, %v387
    %v389 = vpop.f32.mrf.mxu0
    %v390 = vadd.f32 0.0, %v389
    %391 = vmatmul.bf16.gmra.mxu0 %v247
    %v392 = vpop.f32.mrf.mxu0
    %v393 = vadd.f32 0.0, %v392
    %v394 = vpop.f32.mrf.mxu0
    %v395 = vadd.f32 0.0, %v394
    %396 = vmatmul.bf16.gmra.mxu0 %v248
    %v397 = vpop.f32.mrf.mxu0
    %v398 = vadd.f32 0.0, %v397
    %v399 = vpop.f32.mrf.mxu0
    %v400 = vadd.f32 0.0, %v399
    %401 = vdwg.mxu0
    %v402 = vld [vmem:[#allocation5] sm:$0x3]
    %v403 = vpack.c.bf16 %v402, %v402
    %v404 = vld [vmem:[#allocation8] sm:$0xf]
    %v405 = vld [vmem:[#allocation8 + $0x4] sm:$0xf]
    %v406 = vld [vmem:[#allocation8 + $0x8] sm:$0xf]
    %v407 = vld [vmem:[#allocation8 + $0xc] sm:$0xf]
    %v408 = vld [vmem:[#allocation8 + $0x10] sm:$0xf]
    %v409 = vld [vmem:[#allocation8 + $0x14] sm:$0xf]
    %v410 = vld [vmem:[%s4] sm:$0x1]
    %v412 = vperm.slane %v410, 0
    %v420 = vunpack.c.l.b16 %v404
    %v421 = vunpack.c.l.b16 %v405
    %v422 = vunpack.c.l.b16 %v406
    %v423 = vunpack.c.l.b16 %v407
    %v424 = vunpack.c.l.b16 %v408
    %v425 = vunpack.c.l.b16 %v409
    %v426 = vpack.c.b16 %v421, %v420
    %v427 = vpack.c.b16 %v423, %v422
    %v428 = vpack.c.b16 %v425, %v424
    %vm432 = vcmask 392192
    %v434 = vsel %vm432, %v403, 0
    %436 = vmatpush.bf16.msra.mxu0 0
    %437 = vmatpush.bf16.msra.mxu0 0
    %438 = vmatpush.bf16.msra.mxu0 0
    %439 = vmatpush.bf16.msra.mxu0 0
    %440 = vmatpush.bf16.msra.mxu0 0
    %441 = vmatpush.bf16.msra.mxu0 %v428
    %442 = vmatpush.bf16.msra.mxu0 %v427
    %443 = vmatpush.bf16.msra.mxu0 %v426
    %444 = vmatmul.bf16.gmra.mxu0 %v434
    %v445 = vpop.f32.mrf.mxu0
    %v446 = vadd.f32 %v412, %v445
    %v447 = vpop.f32.mrf.mxu0
    %448 = vdwg.mxu0
    %v450 = vrot.slane %v446, 1
    %v451 = vperm.slane %v446, 0
    %v452 = vperm.slane %v450, 0
    %v455 = vadd.f32 %v323, %v451
    %v456 = vadd.f32 %v325, %v451
    %v457 = vadd.f32 %v328, %v451
    %v458 = vadd.f32 %v330, %v451
    %v459 = vadd.f32 %v333, %v451
    %v460 = vadd.f32 %v335, %v451
    %v461 = vadd.f32 %v338, %v451
    %v462 = vadd.f32 %v340, %v451
    %v463 = vadd.f32 %v343, %v451
    %v464 = vadd.f32 %v345, %v451
    %v465 = vadd.f32 %v348, %v451
    %v466 = vadd.f32 %v350, %v451
    %v467 = vadd.f32 %v353, %v451
    %v468 = vadd.f32 %v355, %v451
    %v469 = vadd.f32 %v358, %v451
    %v470 = vadd.f32 %v360, %v451
    %v471 = vadd.f32 %v363, %v452
    %v472 = vadd.f32 %v365, %v452
    %v473 = vadd.f32 %v368, %v452
    %v474 = vadd.f32 %v370, %v452
    %v475 = vadd.f32 %v373, %v452
    %v476 = vadd.f32 %v375, %v452
    %v477 = vadd.f32 %v378, %v452
    %v478 = vadd.f32 %v380, %v452
    %v479 = vadd.f32 %v383, %v452
    %v480 = vadd.f32 %v385, %v452
    %v481 = vadd.f32 %v388, %v452
    %v482 = vadd.f32 %v390, %v452
    %v483 = vadd.f32 %v393, %v452
    %v484 = vadd.f32 %v395, %v452
    %v485 = vadd.f32 %v398, %v452
    %v486 = vadd.f32 %v400, %v452
    %v487 = vmax.f32 %v455, 0.0
    %v488 = vmax.f32 %v456, 0.0
    %v489 = vmax.f32 %v457, 0.0
    %v490 = vmax.f32 %v458, 0.0
    %v491 = vmax.f32 %v459, 0.0
    %v492 = vmax.f32 %v460, 0.0
    %v493 = vmax.f32 %v461, 0.0
    %v494 = vmax.f32 %v462, 0.0
    %v495 = vmax.f32 %v463, 0.0
    %v496 = vmax.f32 %v464, 0.0
    %v497 = vmax.f32 %v465, 0.0
    %v498 = vmax.f32 %v466, 0.0
    %v499 = vmax.f32 %v467, 0.0
    %v500 = vmax.f32 %v468, 0.0
    %v501 = vmax.f32 %v469, 0.0
    %v502 = vmax.f32 %v470, 0.0
    %v503 = vmax.f32 %v471, 0.0
    %v504 = vmax.f32 %v472, 0.0
    %v505 = vmax.f32 %v473, 0.0
    %v506 = vmax.f32 %v474, 0.0
    %v507 = vmax.f32 %v475, 0.0
    %v508 = vmax.f32 %v476, 0.0
    %v509 = vmax.f32 %v477, 0.0
    %v510 = vmax.f32 %v478, 0.0
    %v511 = vmax.f32 %v479, 0.0
    %v512 = vmax.f32 %v480, 0.0
    %v513 = vmax.f32 %v481, 0.0
    %v514 = vmax.f32 %v482, 0.0
    %v515 = vmax.f32 %v483, 0.0
    %v516 = vmax.f32 %v484, 0.0
    %v517 = vmax.f32 %v485, 0.0
    %v518 = vmax.f32 %v486, 0.0
    %v519 = vld [vmem:[%s5] sm:$0x1]
    %v521 = vperm.slane %v519, 0
    %v523 = vmul.f32 %v487, %v521
    %v524 = vmul.f32 %v488, %v521
    %v525 = vmul.f32 %v489, %v521
    %v526 = vmul.f32 %v490, %v521
    %v527 = vmul.f32 %v491, %v521
    %v528 = vmul.f32 %v492, %v521
    %v529 = vmul.f32 %v493, %v521
    %v530 = vmul.f32 %v494, %v521
    %v531 = vmul.f32 %v495, %v521
    %v532 = vmul.f32 %v496, %v521
    %v533 = vmul.f32 %v497, %v521
    %v534 = vmul.f32 %v498, %v521
    %v535 = vmul.f32 %v499, %v521
    %v536 = vmul.f32 %v500, %v521
    %v537 = vmul.f32 %v501, %v521
    %v538 = vmul.f32 %v502, %v521
    %v539 = vmul.f32 %v503, %v521
    %v540 = vmul.f32 %v504, %v521
    %v541 = vmul.f32 %v505, %v521
    %v542 = vmul.f32 %v506, %v521
    %v543 = vmul.f32 %v507, %v521
    %v544 = vmul.f32 %v508, %v521
    %v545 = vmul.f32 %v509, %v521
    %v546 = vmul.f32 %v510, %v521
    %v547 = vmul.f32 %v511, %v521
    %v548 = vmul.f32 %v512, %v521
    %v549 = vmul.f32 %v513, %v521
    %v550 = vmul.f32 %v514, %v521
    %v551 = vmul.f32 %v515, %v521
    %v552 = vmul.f32 %v516, %v521
    %v553 = vmul.f32 %v517, %v521
    %v554 = vmul.f32 %v518, %v521
    %555 = vadd.xlane.f32.xlu0 %v523
    %v556 = vpop.xlane.xlu0 %555
    %557 = vadd.xlane.f32.xlu0 %v524
    %v558 = vpop.xlane.xlu0 %557
    %559 = vadd.xlane.f32.xlu0 %v525
    %v560 = vpop.xlane.xlu0 %559
    %561 = vadd.xlane.f32.xlu0 %v526
    %v562 = vpop.xlane.xlu0 %561
    %563 = vadd.xlane.f32.xlu0 %v527
    %v564 = vpop.xlane.xlu0 %563
    %565 = vadd.xlane.f32.xlu0 %v528
    %v566 = vpop.xlane.xlu0 %565
    %567 = vadd.xlane.f32.xlu0 %v529
    %v568 = vpop.xlane.xlu0 %567
    %569 = vadd.xlane.f32.xlu0 %v530
    %v570 = vpop.xlane.xlu0 %569
    %571 = vadd.xlane.f32.xlu0 %v531
    %v572 = vpop.xlane.xlu0 %571
    %573 = vadd.xlane.f32.xlu0 %v532
    %v574 = vpop.xlane.xlu0 %573
    %575 = vadd.xlane.f32.xlu0 %v533
    %v576 = vpop.xlane.xlu0 %575
    %577 = vadd.xlane.f32.xlu0 %v534
    %v578 = vpop.xlane.xlu0 %577
    %579 = vadd.xlane.f32.xlu0 %v535
    %v580 = vpop.xlane.xlu0 %579
    %581 = vadd.xlane.f32.xlu0 %v536
    %v582 = vpop.xlane.xlu0 %581
    %583 = vadd.xlane.f32.xlu0 %v537
    %v584 = vpop.xlane.xlu0 %583
    %585 = vadd.xlane.f32.xlu0 %v538
    %v586 = vpop.xlane.xlu0 %585
    %587 = vadd.xlane.f32.xlu0 %v539
    %v588 = vpop.xlane.xlu0 %587
    %589 = vadd.xlane.f32.xlu0 %v540
    %v590 = vpop.xlane.xlu0 %589
    %591 = vadd.xlane.f32.xlu0 %v541
    %v592 = vpop.xlane.xlu0 %591
    %593 = vadd.xlane.f32.xlu0 %v542
    %v594 = vpop.xlane.xlu0 %593
    %595 = vadd.xlane.f32.xlu0 %v543
    %v596 = vpop.xlane.xlu0 %595
    %597 = vadd.xlane.f32.xlu0 %v544
    %v598 = vpop.xlane.xlu0 %597
    %599 = vadd.xlane.f32.xlu0 %v545
    %v600 = vpop.xlane.xlu0 %599
    %601 = vadd.xlane.f32.xlu0 %v546
    %v602 = vpop.xlane.xlu0 %601
    %603 = vadd.xlane.f32.xlu0 %v547
    %v604 = vpop.xlane.xlu0 %603
    %605 = vadd.xlane.f32.xlu0 %v548
    %v606 = vpop.xlane.xlu0 %605
    %607 = vadd.xlane.f32.xlu0 %v549
    %v608 = vpop.xlane.xlu0 %607
    %609 = vadd.xlane.f32.xlu0 %v550
    %v610 = vpop.xlane.xlu0 %609
    %611 = vadd.xlane.f32.xlu0 %v551
    %v612 = vpop.xlane.xlu0 %611
    %613 = vadd.xlane.f32.xlu0 %v552
    %v614 = vpop.xlane.xlu0 %613
    %615 = vadd.xlane.f32.xlu0 %v553
    %v616 = vpop.xlane.xlu0 %615
    %617 = vadd.xlane.f32.xlu0 %v554
    %v618 = vpop.xlane.xlu0 %617
    %v619 = vlaneseq
    %v620 = vand.u32 %v619, 127
    %vm621 = vcmp.lt.s32.totalorder %v620, 16
    %v654 = vperm.slane %v556, %v620
    %v655 = vadd.s32 %v620, 4294967288
    %v656 = vperm.slane %v558, %v655
    %vm657 = vcmask 130112
    %v658 = vsel %vm657, %v656, %v654
    %v659 = vadd.s32 %v620, 4294967280
    %v660 = vperm.slane %v560, %v659
    %vm661 = vcmask 195712
    %v662 = vsel %vm661, %v660, %v658
    %v663 = vadd.s32 %v620, 4294967272
    %v664 = vperm.slane %v562, %v663
    %vm665 = vcmask 261312
    %v666 = vsel %vm665, %v664, %v662
    %v667 = vadd.s32 %v620, 4294967264
    %v668 = vperm.slane %v564, %v667
    %vm669 = vcmask 326912
    %v670 = vsel %vm669, %v668, %v666
    %v671 = vadd.s32 %v620, 4294967256
    %v672 = vperm.slane %v566, %v671
    %vm673 = vcmask 392512
    %v674 = vsel %vm673, %v672, %v670
    %v675 = vadd.s32 %v620, 4294967248
    %v676 = vperm.slane %v568, %v675
    %vm677 = vcmask 458112
    %v678 = vsel %vm677, %v676, %v674
    %v679 = vadd.s32 %v620, 4294967240
    %v680 = vperm.slane %v570, %v679
    %vm681 = vcmask 523712
    %v682 = vsel %vm681, %v680, %v678
    %v683 = vadd.s32 %v620, 4294967232
    %v684 = vperm.slane %v572, %v683
    %vm685 = vcmask 589312
    %v686 = vsel %vm685, %v684, %v682
    %v687 = vadd.s32 %v620, 4294967224
    %v688 = vperm.slane %v574, %v687
    %vm689 = vcmask 654912
    %v690 = vsel %vm689, %v688, %v686
    %v691 = vadd.s32 %v620, 4294967216
    %v692 = vperm.slane %v576, %v691
    %vm693 = vcmask 720512
    %v694 = vsel %vm693, %v692, %v690
    %v695 = vadd.s32 %v620, 4294967208
    %v696 = vperm.slane %v578, %v695
    %vm697 = vcmask 786112
    %v698 = vsel %vm697, %v696, %v694
    %v699 = vadd.s32 %v620, 4294967200
    %v700 = vperm.slane %v580, %v699
    %vm701 = vcmask 851712
    %v702 = vsel %vm701, %v700, %v698
    %v703 = vadd.s32 %v620, 4294967192
    %v704 = vperm.slane %v582, %v703
    %vm705 = vcmask 917312
    %v706 = vsel %vm705, %v704, %v702
    %v707 = vadd.s32 %v620, 4294967184
    %v708 = vperm.slane %v584, %v707
    %vm709 = vcmask 982912
    %v710 = vsel %vm709, %v708, %v706
    %v711 = vadd.s32 %v620, 4294967176
    %v712 = vperm.slane %v586, %v711
    %vm713 = vcmask 1048512
    %v714 = vsel %vm713, %v712, %v710
    %v715 = vperm.slane %v588, %v620
    %v716 = vperm.slane %v590, %v655
    %v717 = vsel %vm657, %v716, %v715
    %v718 = vperm.slane %v592, %v659
    %v719 = vsel %vm661, %v718, %v717
    %v720 = vperm.slane %v594, %v663
    %v721 = vsel %vm665, %v720, %v719
    %v722 = vperm.slane %v596, %v667
    %v723 = vsel %vm669, %v722, %v721
    %v724 = vperm.slane %v598, %v671
    %v725 = vsel %vm673, %v724, %v723
    %v726 = vperm.slane %v600, %v675
    %v727 = vsel %vm677, %v726, %v725
    %v728 = vperm.slane %v602, %v679
    %v729 = vsel %vm681, %v728, %v727
    %v730 = vperm.slane %v604, %v683
    %v731 = vsel %vm685, %v730, %v729
    %v732 = vperm.slane %v606, %v687
    %v733 = vsel %vm689, %v732, %v731
    %v734 = vperm.slane %v608, %v691
    %v735 = vsel %vm693, %v734, %v733
    %v736 = vperm.slane %v610, %v695
    %v737 = vsel %vm697, %v736, %v735
    %v738 = vperm.slane %v612, %v699
    %v739 = vsel %vm701, %v738, %v737
    %v740 = vperm.slane %v614, %v703
    %v741 = vsel %vm705, %v740, %v739
    %v742 = vperm.slane %v616, %v707
    %v743 = vsel %vm709, %v742, %v741
    %v744 = vperm.slane %v618, %v711
    %v745 = vsel %vm713, %v744, %v743
    %vm746 = vcmask 1041409
    %v747 = vsel %vm746, %v745, %v714
    %v749 = vsel %vm621, %v747, -inf
    %vm750 = vcmask 1041408
    %v751 = vsel %vm750, %v749, -inf
    %752 = vmax.xlane.f32.xlu0 %v751
    %v753 = vpop.xlane.xlu0 %752
    %v754 = vsub.f32 %v749, %v753
    %v755 = vmul.f32 %v754, 1.442695
    %v756 = vpow.pop %v755
    %v757 = vsel %vm750, %v756, 0.0
    %758 = vadd.xlane.f32.xlu0 %v757
    %v759 = vpop.xlane.xlu0 %758
    %v760 = vrcp.pop %v759
    %v761 = vmul.f32 %v756, %v760
    %762 = vst [vmem:[#allocation11] sm:$0x3] %v761
    %v763 = vperm.slane %v761, 0
    %v764 = vlaneseq
    %v765 = vshrl.u32 %v764, 7
    %767 = vset.pattern.permute.xlu0 %v765
    %768 = vperm.xlu0 %767, %v763
    %v769 = vpop.permute.xlu0 %768
    %v770 = vlaneseq
    %v771 = vshrl.u32 %v770, 7
    %v772 = vadd.s32 %v771, 8
    %773 = vset.pattern.permute.xlu0 %v772
    %774 = vperm.xlu0 %773, %v763
    %v775 = vpop.permute.xlu0 %774
    %v776 = vlaneseq
    %v777 = vshrl.u32 %v776, 7
    %v778 = vadd.s32 %v777, 16
    %779 = vset.pattern.permute.xlu0 %v778
    %780 = vperm.xlu0 %779, %v763
    %v781 = vpop.permute.xlu0 %780
    %v782 = vlaneseq
    %v783 = vshrl.u32 %v782, 7
    %v784 = vadd.s32 %v783, 24
    %785 = vset.pattern.permute.xlu0 %v784
    %786 = vperm.xlu0 %785, %v763
    %v787 = vpop.permute.xlu0 %786
    %v788 = vlaneseq
    %v789 = vshrl.u32 %v788, 7
    %v790 = vadd.s32 %v789, 32
    %791 = vset.pattern.permute.xlu0 %v790
    %792 = vperm.xlu0 %791, %v763
    %v793 = vpop.permute.xlu0 %792
    %v794 = vlaneseq
    %v795 = vshrl.u32 %v794, 7
    %v796 = vadd.s32 %v795, 40
    %797 = vset.pattern.permute.xlu0 %v796
    %798 = vperm.xlu0 %797, %v763
    %v799 = vpop.permute.xlu0 %798
    %v800 = vlaneseq
    %v801 = vshrl.u32 %v800, 7
    %v802 = vadd.s32 %v801, 48
    %803 = vset.pattern.permute.xlu0 %v802
    %804 = vperm.xlu0 %803, %v763
    %v805 = vpop.permute.xlu0 %804
    %v806 = vlaneseq
    %v807 = vshrl.u32 %v806, 7
    %v808 = vadd.s32 %v807, 56
    %809 = vset.pattern.permute.xlu0 %v808
    %810 = vperm.xlu0 %809, %v763
    %v811 = vpop.permute.xlu0 %810
    %v812 = vlaneseq
    %v813 = vshrl.u32 %v812, 7
    %v814 = vadd.s32 %v813, 64
    %815 = vset.pattern.permute.xlu0 %v814
    %816 = vperm.xlu0 %815, %v763
    %v817 = vpop.permute.xlu0 %816
    %v818 = vlaneseq
    %v819 = vshrl.u32 %v818, 7
    %v820 = vadd.s32 %v819, 72
    %821 = vset.pattern.permute.xlu0 %v820
    %822 = vperm.xlu0 %821, %v763
    %v823 = vpop.permute.xlu0 %822
    %v824 = vlaneseq
    %v825 = vshrl.u32 %v824, 7
    %v826 = vadd.s32 %v825, 80
    %827 = vset.pattern.permute.xlu0 %v826
    %828 = vperm.xlu0 %827, %v763
    %v829 = vpop.permute.xlu0 %828
    %v830 = vlaneseq
    %v831 = vshrl.u32 %v830, 7
    %v832 = vadd.s32 %v831, 88
    %833 = vset.pattern.permute.xlu0 %v832
    %834 = vperm.xlu0 %833, %v763
    %v835 = vpop.permute.xlu0 %834
    %v836 = vlaneseq
    %v837 = vshrl.u32 %v836, 7
    %v838 = vadd.s32 %v837, 96
    %839 = vset.pattern.permute.xlu0 %v838
    %840 = vperm.xlu0 %839, %v763
    %v841 = vpop.permute.xlu0 %840
    %v842 = vlaneseq
    %v843 = vshrl.u32 %v842, 7
    %v844 = vadd.s32 %v843, 104
    %845 = vset.pattern.permute.xlu0 %v844
    %846 = vperm.xlu0 %845, %v763
    %v847 = vpop.permute.xlu0 %846
    %v848 = vlaneseq
    %v849 = vshrl.u32 %v848, 7
    %v850 = vadd.s32 %v849, 112
    %851 = vset.pattern.permute.xlu0 %v850
    %852 = vperm.xlu0 %851, %v763
    %v853 = vpop.permute.xlu0 %852
    %v854 = vlaneseq
    %v855 = vshrl.u32 %v854, 7
    %v856 = vadd.s32 %v855, 120
    %857 = vset.pattern.permute.xlu0 %v856
    %858 = vperm.xlu0 %857, %v763
    %v859 = vpop.permute.xlu0 %858
    %v860 = vperm.slane %v761, 1
    %v861 = vlaneseq
    %v862 = vshrl.u32 %v861, 7
    %864 = vset.pattern.permute.xlu0 %v862
    %865 = vperm.xlu0 %864, %v860
    %v866 = vpop.permute.xlu0 %865
    %v867 = vlaneseq
    %v868 = vshrl.u32 %v867, 7
    %v869 = vadd.s32 %v868, 8
    %870 = vset.pattern.permute.xlu0 %v869
    %871 = vperm.xlu0 %870, %v860
    %v872 = vpop.permute.xlu0 %871
    %v873 = vlaneseq
    %v874 = vshrl.u32 %v873, 7
    %v875 = vadd.s32 %v874, 16
    %876 = vset.pattern.permute.xlu0 %v875
    %877 = vperm.xlu0 %876, %v860
    %v878 = vpop.permute.xlu0 %877
    %v879 = vlaneseq
    %v880 = vshrl.u32 %v879, 7
    %v881 = vadd.s32 %v880, 24
    %882 = vset.pattern.permute.xlu0 %v881
    %883 = vperm.xlu0 %882, %v860
    %v884 = vpop.permute.xlu0 %883
    %v885 = vlaneseq
    %v886 = vshrl.u32 %v885, 7
    %v887 = vadd.s32 %v886, 32
    %888 = vset.pattern.permute.xlu0 %v887
    %889 = vperm.xlu0 %888, %v860
    %v890 = vpop.permute.xlu0 %889
    %v891 = vlaneseq
    %v892 = vshrl.u32 %v891, 7
    %v893 = vadd.s32 %v892, 40
    %894 = vset.pattern.permute.xlu0 %v893
    %895 = vperm.xlu0 %894, %v860
    %v896 = vpop.permute.xlu0 %895
    %v897 = vlaneseq
    %v898 = vshrl.u32 %v897, 7
    %v899 = vadd.s32 %v898, 48
    %900 = vset.pattern.permute.xlu0 %v899
    %901 = vperm.xlu0 %900, %v860
    %v902 = vpop.permute.xlu0 %901
    %v903 = vlaneseq
    %v904 = vshrl.u32 %v903, 7
    %v905 = vadd.s32 %v904, 56
    %906 = vset.pattern.permute.xlu0 %v905
    %907 = vperm.xlu0 %906, %v860
    %v908 = vpop.permute.xlu0 %907
    %v909 = vlaneseq
    %v910 = vshrl.u32 %v909, 7
    %v911 = vadd.s32 %v910, 64
    %912 = vset.pattern.permute.xlu0 %v911
    %913 = vperm.xlu0 %912, %v860
    %v914 = vpop.permute.xlu0 %913
    %v915 = vlaneseq
    %v916 = vshrl.u32 %v915, 7
    %v917 = vadd.s32 %v916, 72
    %918 = vset.pattern.permute.xlu0 %v917
    %919 = vperm.xlu0 %918, %v860
    %v920 = vpop.permute.xlu0 %919
    %v921 = vlaneseq
    %v922 = vshrl.u32 %v921, 7
    %v923 = vadd.s32 %v922, 80
    %924 = vset.pattern.permute.xlu0 %v923
    %925 = vperm.xlu0 %924, %v860
    %v926 = vpop.permute.xlu0 %925
    %v927 = vlaneseq
    %v928 = vshrl.u32 %v927, 7
    %v929 = vadd.s32 %v928, 88
    %930 = vset.pattern.permute.xlu0 %v929
    %931 = vperm.xlu0 %930, %v860
    %v932 = vpop.permute.xlu0 %931
    %v933 = vlaneseq
    %v934 = vshrl.u32 %v933, 7
    %v935 = vadd.s32 %v934, 96
    %936 = vset.pattern.permute.xlu0 %v935
    %937 = vperm.xlu0 %936, %v860
    %v938 = vpop.permute.xlu0 %937
    %v939 = vlaneseq
    %v940 = vshrl.u32 %v939, 7
    %v941 = vadd.s32 %v940, 104
    %942 = vset.pattern.permute.xlu0 %v941
    %943 = vperm.xlu0 %942, %v860
    %v944 = vpop.permute.xlu0 %943
    %v945 = vlaneseq
    %v946 = vshrl.u32 %v945, 7
    %v947 = vadd.s32 %v946, 112
    %948 = vset.pattern.permute.xlu0 %v947
    %949 = vperm.xlu0 %948, %v860
    %v950 = vpop.permute.xlu0 %949
    %v951 = vlaneseq
    %v952 = vshrl.u32 %v951, 7
    %v953 = vadd.s32 %v952, 120
    %954 = vset.pattern.permute.xlu0 %v953
    %955 = vperm.xlu0 %954, %v860
    %v956 = vpop.permute.xlu0 %955
    %v957 = vmul.f32 %v89, %v769
    %v958 = vmul.f32 %v90, %v775
    %v959 = vmul.f32 %v91, %v781
    %v960 = vmul.f32 %v92, %v787
    %v961 = vmul.f32 %v93, %v793
    %v962 = vmul.f32 %v94, %v799
    %v963 = vmul.f32 %v95, %v805
    %v964 = vmul.f32 %v96, %v811
    %v965 = vmul.f32 %v97, %v817
    %v966 = vmul.f32 %v98, %v823
    %v967 = vmul.f32 %v99, %v829
    %v968 = vmul.f32 %v100, %v835
    %v969 = vmul.f32 %v101, %v841
    %v970 = vmul.f32 %v102, %v847
    %v971 = vmul.f32 %v103, %v853
    %v972 = vmul.f32 %v104, %v859
    %v973 = vmul.f32 %v105, %v866
    %v974 = vmul.f32 %v106, %v872
    %v975 = vmul.f32 %v107, %v878
    %v976 = vmul.f32 %v108, %v884
    %v977 = vmul.f32 %v109, %v890
    %v978 = vmul.f32 %v110, %v896
    %v979 = vmul.f32 %v111, %v902
    %v980 = vmul.f32 %v112, %v908
    %v981 = vmul.f32 %v113, %v914
    %v982 = vmul.f32 %v114, %v920
    %v983 = vmul.f32 %v115, %v926
    %v984 = vmul.f32 %v116, %v932
    %v985 = vmul.f32 %v117, %v938
    %v986 = vmul.f32 %v118, %v944
    %v987 = vmul.f32 %v119, %v950
    %v988 = vmul.f32 %v120, %v956
    %v989 = vadd.f32 %v957, %v958
    %v990 = vadd.f32 %v989, %v959
    %v991 = vadd.f32 %v990, %v960
    %v992 = vadd.f32 %v991, %v961
    %v993 = vadd.f32 %v992, %v962
    %v994 = vadd.f32 %v993, %v963
    %v995 = vadd.f32 %v994, %v964
    %v996 = vadd.f32 %v995, %v965
    %v997 = vadd.f32 %v996, %v966
    %v998 = vadd.f32 %v997, %v967
    %v999 = vadd.f32 %v998, %v968
    %v1000 = vadd.f32 %v999, %v969
    %v1001 = vadd.f32 %v1000, %v970
    %v1002 = vadd.f32 %v1001, %v971
    %v1003 = vadd.f32 %v1002, %v972
    %v1004 = vrot.slane %v1003, 4
    %v1005 = vadd.f32 %v1003, %v1004
    %v1006 = vrot.slane %v1005, 2
    %v1007 = vadd.f32 %v1005, %v1006
    %v1008 = vrot.slane %v1007, 1
    %v1009 = vadd.f32 %v1007, %v1008
    %v1010 = vadd.f32 %v973, %v974
    %v1011 = vadd.f32 %v1010, %v975
    %v1012 = vadd.f32 %v1011, %v976
    %v1013 = vadd.f32 %v1012, %v977
    %v1014 = vadd.f32 %v1013, %v978
    %v1015 = vadd.f32 %v1014, %v979
    %v1016 = vadd.f32 %v1015, %v980
    %v1017 = vadd.f32 %v1016, %v981
    %v1018 = vadd.f32 %v1017, %v982
    %v1019 = vadd.f32 %v1018, %v983
    %v1020 = vadd.f32 %v1019, %v984
    %v1021 = vadd.f32 %v1020, %v985
    %v1022 = vadd.f32 %v1021, %v986
    %v1023 = vadd.f32 %v1022, %v987
    %v1024 = vadd.f32 %v1023, %v988
    %v1025 = vrot.slane %v1024, 4
    %v1026 = vadd.f32 %v1024, %v1025
    %v1027 = vrot.slane %v1026, 2
    %v1028 = vadd.f32 %v1026, %v1027
    %v1029 = vrot.slane %v1028, 1
    %v1030 = vadd.f32 %v1028, %v1029
    %v1033 = vsel %vm746, %v1030, %v1009
    %1035 = vst [vmem:[#allocation10] sm:$0x3] %v1033
    // Predicated region
    $region42: #{tpu_custom_call.1} parent=1 // pred_check
      _
    $region43: #{tpu_custom_call.1} parent=1 // pred_check_branch
      %1037 = sbr.rel (0) target = $region45
    $region44: #{tpu_custom_call.1} parent=1 // pred_region
      %1039 = vsyncadd [#allocation4], 0
      %s1041 = sshll.u32 [#allocation10], 4
      %s1042 = int_to_ptr.vmem [resolvable:$true] %s1041
      %s1043 = sshll.u32 %s6, 4
      %s1044 = int_to_ptr.hbm [resolvable:$true] %s1043
      %1046 = dma.vmem_to_hbm [thread:$0]  %s1042, 32, %s1044, [#allocation4]
    $region45: #{tpu_custom_call.1} parent=1 // pred_fallthru
      _
    // Predicated region
    $region46: #{tpu_custom_call.1} parent=1 // pred_check
      _
    $region47: #{tpu_custom_call.1} parent=1 // pred_check_branch
      %1048 = sbr.rel (0) target = $region49
    $region48: #{tpu_custom_call.1} parent=1 // pred_region
      %1050 = vsyncadd [#allocation12], 0
      %s1052 = sshll.u32 [#allocation11], 4
      %s1053 = int_to_ptr.vmem [resolvable:$true] %s1052
      %s1054 = sshll.u32 %s7, 4
      %s1055 = int_to_ptr.hbm [resolvable:$true] %s1054
      %1057 = dma.vmem_to_hbm [thread:$0]  %s1053, 32, %s1055, [#allocation12]
    $region49: #{tpu_custom_call.1} parent=1 // pred_fallthru
      _
    // Predicated region
    $region50: #{tpu_custom_call.1} parent=1 // pred_check
      _
    $region51: #{tpu_custom_call.1} parent=1 // pred_check_branch
      %1059 = sbr.rel (0) target = $region53
    $region52: #{tpu_custom_call.1} parent=1 // pred_region
      %1061 = dma.done [#allocation4], 32
    $region53: #{tpu_custom_call.1} parent=1 // pred_fallthru
      _
    // Predicated region
    $region54: #{tpu_custom_call.1} parent=1 // pred_check
      _
    $region55: #{tpu_custom_call.1} parent=1 // pred_check_branch
      %1063 = sbr.rel (0) target = $region57
    $region56: #{tpu_custom_call.1} parent=1 // pred_region
      %1065 = dma.done [#allocation12], 32
    $region57: #{tpu_custom_call.1} parent=1 // pred_fallthru
      _
    %1066 = vsyncpa [#allocation3], 1
    %1067 = vsyncpa [#allocation6], 1
    %1068 = vsyncpa [#allocation9], 1
    %1069 = vsyncpa [#allocation4], 1
    %1070 = vsyncpa [#allocation12], 1

</llo_original>
